<compile_context>
chip_gen: v6e
topology: v6e:2x2x1
jax: 0.10.0
libtpu: 0.0.40
codegen_flags: <defaults>
</compile_context>

<pallas_src>
import jax
import jax.numpy as jnp
from jax.experimental import pallas as pl
from jax.experimental.pallas import tpu as pltpu

LANE = 128      # lane width / padded hidden dim
IN_F = 32       # true input features (kept unpadded -> 4x less input DMA)
HID = 100       # true hidden width (zero-padded to 128 lanes)
OUT_F = 6       # true output features
OUT_PAD = 8     # output features padded to one sublane (full-dim block)
N_LAYERS = 4


def fcnet_kernel(x_ref, w_ref, b_ref, o_ref):
    # x_ref: (tb, 32) f32   w_ref: (4, 128, 128) bf16   b_ref: (4, 1, 128) f32
    # o_ref: (tb, 8) f32.   Padded weight rows/cols & bias lanes are zero.
    #
    # Matmul operands in bf16 (MXU-native on all gens), accumulate in f32.
    # Bias-add / tanh stay f32 (v5e has no bf16 VPU/EUP); on v6e/v7x a bf16
    # tanh is a further option if profiling shows the EUP slot binding.
    y = jnp.dot(x_ref[...].astype(jnp.bfloat16), w_ref[0, :IN_F, :],
                preferred_element_type=jnp.float32) + b_ref[0]
    y = jnp.tanh(y)
    y = jnp.dot(y.astype(jnp.bfloat16), w_ref[1],
                preferred_element_type=jnp.float32) + b_ref[1]
    y = jnp.tanh(y)
    y = jnp.dot(y.astype(jnp.bfloat16), w_ref[2],
                preferred_element_type=jnp.float32) + b_ref[2]
    y = jnp.tanh(y)
    y = jnp.dot(y.astype(jnp.bfloat16), w_ref[3],
                preferred_element_type=jnp.float32) + b_ref[3]
    # Only the first 8 (of 128) output lanes are meaningful; store the narrow
    # slab -> ~16x less output HBM writeback than a 128-lane store.
    o_ref[...] = y[:, :OUT_PAD].astype(o_ref.dtype)


def pack_params(params):
    """One-time (init-time) packing. Do NOT call per forward.

    Zero-pads every layer to 128x128 / 128, stacks the 4 weights into one
    bf16 (4,128,128) slab and the 4 biases into one f32 (4,1,128) slab."""
    w = jnp.zeros((N_LAYERS, LANE, LANE), jnp.float32)
    b = jnp.zeros((N_LAYERS, 1, LANE), jnp.float32)
    for i, (wi, bi) in enumerate(params):
        w = w.at[i, :wi.shape[0], :wi.shape[1]].set(wi)
        b = b.at[i, 0, :bi.shape[-1]].set(bi.reshape(-1))
    return w.astype(jnp.bfloat16), b


def _round_up(n, m):
    return ((n + m - 1) // m) * m


def _plan_batch(B, batch_tile):
    """Choose (padded batch, batch tile).

    Tiles are sublane-aligned and kept large (even tb=2048 is only a few MiB
    double-buffered in VMEM).  For mid/large batches that would otherwise be
    a single grid step we halve the tile so the 'parallel' axis has >= 2
    steps and can shard across v7x's two TensorCores (harmless on v5e/v6e)."""
    batch_tile = max(8, _round_up(batch_tile, 8))
    b_min = _round_up(B, 8)
    tb = min(batch_tile, b_min)
    if b_min > 512 and b_min <= tb:
        tb = _round_up(pl.cdiv(b_min, 2), 8)
    b_pad = _round_up(B, tb)
    return b_pad, tb


def fcnet_forward(x, w_packed, b_packed, batch_tile=1024):
    """x: (B, 32) f32.  w_packed/b_packed: from pack_params (built once)."""
    B, f_in = x.shape
    assert f_in == IN_F, f_in
    b_pad, tb = _plan_batch(B, batch_tile)
    if b_pad != B:
        # Pad batch rows only; the feature dim stays at 32 (no lane padding).
        x = jnp.pad(x, ((0, b_pad - B), (0, 0)))

    out = pl.pallas_call(
        fcnet_kernel,
        out_shape=jax.ShapeDtypeStruct((b_pad, OUT_PAD), jnp.float32),
        grid=(b_pad // tb,),
        in_specs=[
            pl.BlockSpec((tb, IN_F), lambda i: (i, 0)),                 # activations
            pl.BlockSpec((N_LAYERS, LANE, LANE), lambda i: (0, 0, 0)),  # weights (VMEM-resident)
            pl.BlockSpec((N_LAYERS, 1, LANE), lambda i: (0, 0, 0)),     # biases  (VMEM-resident)
        ],
        out_specs=pl.BlockSpec((tb, OUT_PAD), lambda i: (i, 0)),
        compiler_params=pltpu.CompilerParams(
            dimension_semantics=("parallel",)),
    )(x, w_packed, b_packed)

    # Tiny slice back to the true (B, 6) result.
    return out[:B, :OUT_F]


def init_linear(key, in_features, out_features):
    # Mimics PyTorch nn.Linear default init:
    # U(-1/sqrt(fan_in), 1/sqrt(fan_in)) for weight and bias.
    kw, kb = jax.random.split(key)
    bound = 1.0 / jnp.sqrt(jnp.float32(in_features))
    w = jax.random.uniform(kw, (in_features, out_features), jnp.float32,
                           minval=-bound, maxval=bound)
    b = jax.random.uniform(kb, (out_features,), jnp.float32,
                           minval=-bound, maxval=bound)
    return w, b


def reference_forward(x, params):
    (w1, b1), (w2, b2), (w3, b3), (w4, b4) = params
    y = jnp.tanh(x @ w1 + b1)
    y = jnp.tanh(y @ w2 + b2)
    y = jnp.tanh(y @ w3 + b3)
    return y @ w4 + b4


if __name__ == "__main__":
    key = jax.random.PRNGKey(0)
    kx, k1, k2, k3, k4 = jax.random.split(key, 5)

    batch = 8
    x = jax.random.normal(kx, (batch, IN_F), jnp.float32)

    params = (
        init_linear(k1, IN_F, HID),
        init_linear(k2, HID, HID),
        init_linear(k3, HID, HID),
        init_linear(k4, HID, OUT_F),
    )

    # Pack once at parameter-init time (hoisted out of the per-call path).
    w_packed, b_packed = pack_params(params)

    out = fcnet_forward(x, w_packed, b_packed)
    out = jax.block_until_ready(out)

    ref = reference_forward(x, params)
    assert out.shape == (batch, OUT_F), out.shape
    # bf16 matmul operands (f32 accumulate) => compare against the f32
    # reference with a correspondingly relaxed tolerance.
    max_err = float(jnp.max(jnp.abs(out - ref)))
    assert jnp.allclose(out, ref, atol=3e-2, rtol=3e-2), max_err

    print("KERNEL_OK")
</pallas_src>

<mosaic_0001>
module attributes {stable_mosaic.version = 11 : i64} {
  func.func @fcnet_kernel(%arg0: i32, %arg1: memref<8x32xf32, #tpu.memory_space<vmem>>, %arg2: memref<4x128x128xbf16, #tpu.memory_space<vmem>>, %arg3: memref<4x1x128xf32, #tpu.memory_space<vmem>>, %arg4: memref<8x8xf32, #tpu.memory_space<vmem>>) attributes {dimension_semantics = [#tpu.dimension_semantics<parallel>], iteration_bounds = array<i64: 1>, scalar_prefetch = 0 : i64, scratch_operands = 0 : i64, tpu.core_type = #tpu.core_type<tc>, window_params = [{transform_indices = @transform_0, window_bounds = array<i64: 8, 32>}, {pipeline_mode = #tpu.pipeline_mode<synchronous>, transform_indices = @transform_1, window_bounds = array<i64: 4, 128, 128>}, {pipeline_mode = #tpu.pipeline_mode<synchronous>, transform_indices = @transform_2, window_bounds = array<i64: 4, 1, 128>}, {transform_indices = @transform_3, window_bounds = array<i64: 8, 8>}]} {
    %c0 = arith.constant 0 : index
    %c0_0 = arith.constant 0 : index
    %0 = vector.load %arg1[%c0, %c0_0] : memref<8x32xf32, #tpu.memory_space<vmem>>, vector<8x32xf32>
    %1 = arith.truncf %0 : vector<8x32xf32> to vector<8x32xbf16>
    %c0_1 = arith.constant 0 : index
    %c0_2 = arith.constant 0 : index
    %c0_3 = arith.constant 0 : index
    %2 = vector.load %arg2[%c0_1, %c0_2, %c0_3] : memref<4x128x128xbf16, #tpu.memory_space<vmem>>, vector<1x32x128xbf16>
    %3 = vector.shape_cast %2 : vector<1x32x128xbf16> to vector<32x128xbf16>
    %cst = arith.constant dense<0.000000e+00> : vector<8x128xf32>
    %4 = tpu.matmul %1, %3, %cst {dimension_numbers = #tpu.dot_dimension_numbers<[1], [0], [0], [1], [0, 0, 1, 1], [], []>} : vector<8x32xbf16>, vector<32x128xbf16>, vector<8x128xf32> -> vector<8x128xf32>
    %c0_4 = arith.constant 0 : index
    %c0_5 = arith.constant 0 : index
    %c0_6 = arith.constant 0 : index
    %5 = vector.load %arg3[%c0_4, %c0_5, %c0_6] : memref<4x1x128xf32, #tpu.memory_space<vmem>>, vector<1x1x128xf32>
    %6 = vector.shape_cast %5 : vector<1x1x128xf32> to vector<1x128xf32>
    %7 = vector.broadcast %6 : vector<1x128xf32> to vector<8x128xf32>
    %8 = arith.addf %4, %7 : vector<8x128xf32>
    %9 = math.tanh %8 : vector<8x128xf32>
    %10 = arith.truncf %9 : vector<8x128xf32> to vector<8x128xbf16>
    %c1 = arith.constant 1 : index
    %c0_7 = arith.constant 0 : index
    %c0_8 = arith.constant 0 : index
    %11 = vector.load %arg2[%c1, %c0_7, %c0_8] : memref<4x128x128xbf16, #tpu.memory_space<vmem>>, vector<1x128x128xbf16>
    %12 = vector.shape_cast %11 : vector<1x128x128xbf16> to vector<128x128xbf16>
    %cst_9 = arith.constant dense<0.000000e+00> : vector<8x128xf32>
    %13 = tpu.matmul %10, %12, %cst_9 {dimension_numbers = #tpu.dot_dimension_numbers<[1], [0], [0], [1], [0, 0, 1, 1], [], []>} : vector<8x128xbf16>, vector<128x128xbf16>, vector<8x128xf32> -> vector<8x128xf32>
    %c1_10 = arith.constant 1 : index
    %c0_11 = arith.constant 0 : index
    %c0_12 = arith.constant 0 : index
    %14 = vector.load %arg3[%c1_10, %c0_11, %c0_12] : memref<4x1x128xf32, #tpu.memory_space<vmem>>, vector<1x1x128xf32>
    %15 = vector.shape_cast %14 : vector<1x1x128xf32> to vector<1x128xf32>
    %16 = vector.broadcast %15 : vector<1x128xf32> to vector<8x128xf32>
    %17 = arith.addf %13, %16 : vector<8x128xf32>
    %18 = math.tanh %17 : vector<8x128xf32>
    %19 = arith.truncf %18 : vector<8x128xf32> to vector<8x128xbf16>
    %c2 = arith.constant 2 : index
    %c0_13 = arith.constant 0 : index
    %c0_14 = arith.constant 0 : index
    %20 = vector.load %arg2[%c2, %c0_13, %c0_14] : memref<4x128x128xbf16, #tpu.memory_space<vmem>>, vector<1x128x128xbf16>
    %21 = vector.shape_cast %20 : vector<1x128x128xbf16> to vector<128x128xbf16>
    %cst_15 = arith.constant dense<0.000000e+00> : vector<8x128xf32>
    %22 = tpu.matmul %19, %21, %cst_15 {dimension_numbers = #tpu.dot_dimension_numbers<[1], [0], [0], [1], [0, 0, 1, 1], [], []>} : vector<8x128xbf16>, vector<128x128xbf16>, vector<8x128xf32> -> vector<8x128xf32>
    %c2_16 = arith.constant 2 : index
    %c0_17 = arith.constant 0 : index
    %c0_18 = arith.constant 0 : index
    %23 = vector.load %arg3[%c2_16, %c0_17, %c0_18] : memref<4x1x128xf32, #tpu.memory_space<vmem>>, vector<1x1x128xf32>
    %24 = vector.shape_cast %23 : vector<1x1x128xf32> to vector<1x128xf32>
    %25 = vector.broadcast %24 : vector<1x128xf32> to vector<8x128xf32>
    %26 = arith.addf %22, %25 : vector<8x128xf32>
    %27 = math.tanh %26 : vector<8x128xf32>
    %28 = arith.truncf %27 : vector<8x128xf32> to vector<8x128xbf16>
    %c3 = arith.constant 3 : index
    %c0_19 = arith.constant 0 : index
    %c0_20 = arith.constant 0 : index
    %29 = vector.load %arg2[%c3, %c0_19, %c0_20] : memref<4x128x128xbf16, #tpu.memory_space<vmem>>, vector<1x128x128xbf16>
    %30 = vector.shape_cast %29 : vector<1x128x128xbf16> to vector<128x128xbf16>
    %cst_21 = arith.constant dense<0.000000e+00> : vector<8x128xf32>
    %31 = tpu.matmul %28, %30, %cst_21 {dimension_numbers = #tpu.dot_dimension_numbers<[1], [0], [0], [1], [0, 0, 1, 1], [], []>} : vector<8x128xbf16>, vector<128x128xbf16>, vector<8x128xf32> -> vector<8x128xf32>
    %c3_22 = arith.constant 3 : index
    %c0_23 = arith.constant 0 : index
    %c0_24 = arith.constant 0 : index
    %32 = vector.load %arg3[%c3_22, %c0_23, %c0_24] : memref<4x1x128xf32, #tpu.memory_space<vmem>>, vector<1x1x128xf32>
    %33 = vector.shape_cast %32 : vector<1x1x128xf32> to vector<1x128xf32>
    %34 = vector.broadcast %33 : vector<1x128xf32> to vector<8x128xf32>
    %35 = arith.addf %31, %34 : vector<8x128xf32>
    %36 = vector.extract_strided_slice %35 {offsets = [0, 0], sizes = [8, 8], strides = [1, 1]} : vector<8x128xf32> to vector<8x8xf32>
    %c0_25 = arith.constant 0 : index
    %c0_26 = arith.constant 0 : index
    %37 = vector.load %arg4[%c0_25, %c0_26] : memref<8x8xf32, #tpu.memory_space<vmem>>, vector<8x8xf32>
    tpu.vector_store %arg4[%c0_25, %c0_26], %36 {strides = array<i32>} : memref<8x8xf32, #tpu.memory_space<vmem>>, vector<8x8xf32>,
    return
  }
  func.func @transform_0(%arg0: i32) -> (i32, i32) {
    %c0_i32 = arith.constant 0 : i32
    %c0_i32_0 = arith.constant 0 : i32
    return %arg0, %c0_i32 : i32, i32
  }
  func.func @transform_1(%arg0: i32) -> (i32, i32, i32) {
    %c0_i32 = arith.constant 0 : i32
    %c0_i32_0 = arith.constant 0 : i32
    %c0_i32_1 = arith.constant 0 : i32
    %c0_i32_2 = arith.constant 0 : i32
    return %c0_i32, %c0_i32_0, %c0_i32_1 : i32, i32, i32
  }
  func.func @transform_2(%arg0: i32) -> (i32, i32, i32) {
    %c0_i32 = arith.constant 0 : i32
    %c0_i32_0 = arith.constant 0 : i32
    %c0_i32_1 = arith.constant 0 : i32
    %c0_i32_2 = arith.constant 0 : i32
    return %c0_i32, %c0_i32_0, %c0_i32_1 : i32, i32, i32
  }
  func.func @transform_3(%arg0: i32) -> (i32, i32) {
    %c0_i32 = arith.constant 0 : i32
    %c0_i32_0 = arith.constant 0 : i32
    return %arg0, %c0_i32 : i32, i32
  }
}

</mosaic_0001>

<llo_original>
// kernel: tpu_custom_call.1
$region0: #{tpu_custom_call.1}
  #allocation0 [shape = 'u32[]', space=smem, size = 0x4, offset = 0x4, fixed_abs, tag = 'smem constant byte address 0x4 - core index']
  #allocation1 [shape = 'u32[144,128]{1,0:T(1,128)}', space=vmem, size = 0x12000, scoped, tag = 'internal scratch']
  %s0 = inlined_call_operand.hbm [shape: f32[8,32], index: 0, kind: input, shape index: {}]
  %s1 = inlined_call_operand.hbm [shape: bf16[4,128,128], index: 1, kind: input, shape index: {}]
  %s2 = inlined_call_operand.hbm [shape: f32[4,1,128], index: 2, kind: input, shape index: {}]
  %s3 = inlined_call_operand.hbm [shape: f32[8,8], index: 3, kind: output, shape index: {}]
  %s4 = sld [smem:[#allocation0]]
  $region34: #{tpu_custom_call.1} parent=0
    _
  %s6 = ssub.s32 1, %s4
  %s7 = scalar_select 0, %s6, %s4
  $region1: #{tpu_custom_call.1} parent=0
    #allocation2 [shape = 'u8[4096]{0}', space=vmem, size = 0x1000, scoped, tag = 'input window, operand 0, single buffered']
    #allocation3 [shape = 's32[1]{0}', space=sflag, size = 0x4, scoped, tag = 'scoped memory for tpu_custom_call.1']
    #allocation4 [shape = 's32[1]{0}', space=sflag, size = 0x4, scoped, tag = 'scoped memory for tpu_custom_call.1']
    #allocation5 [shape = 'u8[131072]{0}', space=vmem, size = 0x20000, scoped, tag = 'input window, operand 1, single buffered']
    #allocation6 [shape = 's32[1]{0}', space=sflag, size = 0x4, scoped, tag = 'scoped memory for tpu_custom_call.1']
    #allocation7 [shape = 'u8[2048]{0}', space=vmem, size = 0x800, scoped, tag = 'input window, operand 2, single buffered']
    #allocation8 [shape = 'u8[4096]{0}', space=vmem, size = 0x1000, scoped, tag = 'output window, operand 0, single buffered']
    %8 = vsyncpa [#allocation3], 0
    %9 = vsyncpa [#allocation6], 0
    %10 = vsyncpa [#allocation4], 0
    // Predicated region
    $region2: #{tpu_custom_call.1} parent=1 // pred_check
      _
    $region3: #{tpu_custom_call.1} parent=1 // pred_check_branch
      %12 = sbr.rel (0) target = $region5
    $region4: #{tpu_custom_call.1} parent=1 // pred_region
      %s14 = ssub.s32 128, 128
      %15 = vsyncadd [#allocation3], %s14
      %s17 = sshll.u32 [#allocation2], 4
      %s18 = int_to_ptr.vmem [resolvable:$true] %s17
      %20 = dma.hbm_to_vmem [thread:$0]  %s0, 128, %s18, [#allocation3]
    $region5: #{tpu_custom_call.1} parent=1 // pred_fallthru
      _
    // Predicated region
    $region6: #{tpu_custom_call.1} parent=1 // pred_check
      _
    $region7: #{tpu_custom_call.1} parent=1 // pred_check_branch
      %22 = sbr.rel (0) target = $region9
    $region8: #{tpu_custom_call.1} parent=1 // pred_region
      %s24 = ssub.s32 4096, 4096
      %25 = vsyncadd [#allocation6], %s24
      %s26 = sshll.u32 [#allocation5], 4
      %s27 = int_to_ptr.vmem [resolvable:$true] %s26
      %32 = dma.hbm_to_vmem [thread:$0]  %s1, 4096, %s27, [#allocation6], 64, 64, 4
    $region9: #{tpu_custom_call.1} parent=1 // pred_fallthru
      _
    // Predicated region
    $region10: #{tpu_custom_call.1} parent=1 // pred_check
      _
    $region11: #{tpu_custom_call.1} parent=1 // pred_check_branch
      %34 = sbr.rel (0) target = $region13
    $region12: #{tpu_custom_call.1} parent=1 // pred_region
      %s36 = ssub.s32 64, 64
      %37 = vsyncadd [#allocation6], %s36
      %s38 = sshll.u32 [#allocation7], 4
      %s39 = int_to_ptr.vmem [resolvable:$true] %s38
      %44 = dma.hbm_to_vmem [thread:$0]  %s2, 64, %s39, [#allocation6], 16, 16, 1
    $region13: #{tpu_custom_call.1} parent=1 // pred_fallthru
      _
    // Predicated region
    $region14: #{tpu_custom_call.1} parent=1 // pred_check
      _
    $region15: #{tpu_custom_call.1} parent=1 // pred_check_branch
      %46 = sbr.rel (0) target = $region17
    $region16: #{tpu_custom_call.1} parent=1 // pred_region
      %47 = dma.done [#allocation3], 128
    $region17: #{tpu_custom_call.1} parent=1 // pred_fallthru
      _
    // Predicated region
    $region18: #{tpu_custom_call.1} parent=1 // pred_check
      _
    $region19: #{tpu_custom_call.1} parent=1 // pred_check_branch
      %49 = sbr.rel (0) target = $region21
    $region20: #{tpu_custom_call.1} parent=1 // pred_region
      %50 = dma.done [#allocation6], 4096
    $region21: #{tpu_custom_call.1} parent=1 // pred_fallthru
      _
    // Predicated region
    $region22: #{tpu_custom_call.1} parent=1 // pred_check
      _
    $region23: #{tpu_custom_call.1} parent=1 // pred_check_branch
      %52 = sbr.rel (0) target = $region25
    $region24: #{tpu_custom_call.1} parent=1 // pred_region
      %53 = dma.done [#allocation6], 64
    $region25: #{tpu_custom_call.1} parent=1 // pred_fallthru
      _
    %v55 = vld [vmem:[#allocation2] sm:$0xff]
    %v56 = vpack.c.bf16 %v55, %v55
    %v57 = vld [vmem:[#allocation5] sm:$0xf]
    %v58 = vld [vmem:[#allocation5 + $0x4] sm:$0xf]
    %v59 = vld [vmem:[#allocation5 + $0x8] sm:$0xf]
    %v60 = vld [vmem:[#allocation5 + $0xc] sm:$0xf]
    %v61 = vld [vmem:[#allocation7] sm:$0x1]
    %v63 = vlaneseq
    %v64 = vshrl.u32 %v63, 7
    %v65 = vsub.s32 0, %v64
    %v66 = vrot.slane %v61, %v65
    %v72 = vunpack.c.l.b16 %v57
    %v73 = vunpack.c.l.b16 %v58
    %v74 = vunpack.c.l.b16 %v59
    %v75 = vunpack.c.l.b16 %v60
    %v76 = vpack.c.b16 %v73, %v72
    %v77 = vpack.c.b16 %v75, %v74
    %vm80 = vcmask 261120
    %v82 = vsel %vm80, %v56, 0
    %84 = vmatprep.subr.bf16.mxu0 0
    %85 = vmatpush1.bf16.msra.mxu0 0
    %86 = vmatprep.subr.bf16.mxu0 0
    %87 = vmatpush1.bf16.msra.mxu0 0
    %88 = vmatprep.subr.bf16.mxu0 0
    %89 = vmatpush1.bf16.msra.mxu0 0
    %90 = vmatprep.subr.bf16.mxu0 0
    %91 = vmatpush1.bf16.msra.mxu0 0
    %92 = vmatprep.subr.bf16.mxu0 0
    %93 = vmatpush1.bf16.msra.mxu0 0
    %94 = vmatprep.subr.bf16.mxu0 0
    %95 = vmatpush1.bf16.msra.mxu0 0
    %96 = vmatprep.subr.bf16.mxu0 0
    %97 = vmatpush1.bf16.msra.mxu0 %v77
    %98 = vmatprep.subr.bf16.mxu0 0
    %99 = vmatpush1.bf16.msra.mxu0 %v76
    %100 = vmatprep.subr.bf16.mxu0 0
    %101 = vmatpush2.bf16.msra.mxu0 0
    %102 = vmatprep.subr.bf16.mxu0 0
    %103 = vmatpush2.bf16.msra.mxu0 0
    %104 = vmatprep.subr.bf16.mxu0 0
    %105 = vmatpush2.bf16.msra.mxu0 0
    %106 = vmatprep.subr.bf16.mxu0 0
    %107 = vmatpush2.bf16.msra.mxu0 0
    %108 = vmatprep.subr.bf16.mxu0 0
    %109 = vmatpush2.bf16.msra.mxu0 0
    %110 = vmatprep.subr.bf16.mxu0 0
    %111 = vmatpush2.bf16.msra.mxu0 0
    %112 = vmatprep.subr.bf16.mxu0 0
    %113 = vmatpush2.bf16.msra.mxu0 0
    %114 = vmatprep.subr.bf16.mxu0 0
    %115 = vmatpush2.bf16.msra.mxu0 0
    %116 = vmatprep.mubr.bf16.mxu0 0
    %117 = vmatmul.mubr.bf16.gmra.mxu0 %v82
    %v118 = vpop.f32.mrf.mxu0
    %v119 = vadd.f32 %v66, %v118
    %v120 = vpop.f32.mrf.mxu0
    %v121 = vpop.f32.mrf.mxu0
    %v122 = vpop.f32.mrf.mxu0
    %123 = vdwg.mxu0
    %v124 = vtanh.pop %v119
    %v125 = vpack.c.bf16 %v124, %v124
    %s126 = scalar_lea.vmem [#allocation5], 64
    %v127 = vld [vmem:[%s126] sm:$0xf]
    %v128 = vld [vmem:[%s126 + $0x4] sm:$0xf]
    %v129 = vld [vmem:[%s126 + $0x8] sm:$0xf]
    %v130 = vld [vmem:[%s126 + $0xc] sm:$0xf]
    %v131 = vld [vmem:[%s126 + $0x10] sm:$0xf]
    %v132 = vld [vmem:[%s126 + $0x14] sm:$0xf]
    %v133 = vld [vmem:[%s126 + $0x18] sm:$0xf]
    %v134 = vld [vmem:[%s126 + $0x1c] sm:$0xf]
    %v135 = vld [vmem:[%s126 + $0x20] sm:$0xf]
    %v136 = vld [vmem:[%s126 + $0x24] sm:$0xf]
    %v137 = vld [vmem:[%s126 + $0x28] sm:$0xf]
    %v138 = vld [vmem:[%s126 + $0x2c] sm:$0xf]
    %v139 = vld [vmem:[%s126 + $0x30] sm:$0xf]
    %v140 = vld [vmem:[%s126 + $0x34] sm:$0xf]
    %v141 = vld [vmem:[%s126 + $0x38] sm:$0xf]
    %v142 = vld [vmem:[%s126 + $0x3c] sm:$0xf]
    %s143 = scalar_lea.vmem [#allocation7], 1
    %v144 = vld [vmem:[%s143] sm:$0x1]
    %v146 = vlaneseq
    %v147 = vshrl.u32 %v146, 7
    %v148 = vsub.s32 0, %v147
    %v149 = vrot.slane %v144, %v148
    %v167 = vunpack.c.l.b16 %v127
    %v168 = vunpack.c.l.b16 %v128
    %v169 = vunpack.c.l.b16 %v129
    %v170 = vunpack.c.l.b16 %v130
    %v171 = vunpack.c.l.b16 %v131
    %v172 = vunpack.c.l.b16 %v132
    %v173 = vunpack.c.l.b16 %v133
    %v174 = vunpack.c.l.b16 %v134
    %v175 = vunpack.c.l.b16 %v135
    %v176 = vunpack.c.l.b16 %v136
    %v177 = vunpack.c.l.b16 %v137
    %v178 = vunpack.c.l.b16 %v138
    %v179 = vunpack.c.l.b16 %v139
    %v180 = vunpack.c.l.b16 %v140
    %v181 = vunpack.c.l.b16 %v141
    %v182 = vunpack.c.l.b16 %v142
    %v183 = vpack.c.b16 %v168, %v167
    %v184 = vpack.c.b16 %v170, %v169
    %v185 = vpack.c.b16 %v172, %v171
    %v186 = vpack.c.b16 %v174, %v173
    %v187 = vpack.c.b16 %v176, %v175
    %v188 = vpack.c.b16 %v178, %v177
    %v189 = vpack.c.b16 %v180, %v179
    %v190 = vpack.c.b16 %v182, %v181
    %199 = vmatprep.subr.bf16.mxu0 0
    %200 = vmatpush1.bf16.msra.mxu0 %v190
    %201 = vmatprep.subr.bf16.mxu0 0
    %202 = vmatpush1.bf16.msra.mxu0 %v189
    %203 = vmatprep.subr.bf16.mxu0 0
    %204 = vmatpush1.bf16.msra.mxu0 %v188
    %205 = vmatprep.subr.bf16.mxu0 0
    %206 = vmatpush1.bf16.msra.mxu0 %v187
    %207 = vmatprep.subr.bf16.mxu0 0
    %208 = vmatpush1.bf16.msra.mxu0 %v186
    %209 = vmatprep.subr.bf16.mxu0 0
    %210 = vmatpush1.bf16.msra.mxu0 %v185
    %211 = vmatprep.subr.bf16.mxu0 0
    %212 = vmatpush1.bf16.msra.mxu0 %v184
    %213 = vmatprep.subr.bf16.mxu0 0
    %214 = vmatpush1.bf16.msra.mxu0 %v183
    %215 = vmatprep.subr.bf16.mxu0 0
    %216 = vmatpush2.bf16.msra.mxu0 0
    %217 = vmatprep.subr.bf16.mxu0 0
    %218 = vmatpush2.bf16.msra.mxu0 0
    %219 = vmatprep.subr.bf16.mxu0 0
    %220 = vmatpush2.bf16.msra.mxu0 0
    %221 = vmatprep.subr.bf16.mxu0 0
    %222 = vmatpush2.bf16.msra.mxu0 0
    %223 = vmatprep.subr.bf16.mxu0 0
    %224 = vmatpush2.bf16.msra.mxu0 0
    %225 = vmatprep.subr.bf16.mxu0 0
    %226 = vmatpush2.bf16.msra.mxu0 0
    %227 = vmatprep.subr.bf16.mxu0 0
    %228 = vmatpush2.bf16.msra.mxu0 0
    %229 = vmatprep.subr.bf16.mxu0 0
    %230 = vmatpush2.bf16.msra.mxu0 0
    %231 = vmatprep.mubr.bf16.mxu0 0
    %232 = vmatmul.mubr.bf16.gmra.mxu0 %v125
    %v233 = vpop.f32.mrf.mxu0
    %v234 = vadd.f32 %v149, %v233
    %v235 = vpop.f32.mrf.mxu0
    %v236 = vpop.f32.mrf.mxu0
    %v237 = vpop.f32.mrf.mxu0
    %238 = vdwg.mxu0
    %v239 = vtanh.pop %v234
    %v240 = vpack.c.bf16 %v239, %v239
    %s241 = scalar_lea.vmem [#allocation5], 128
    %v242 = vld [vmem:[%s241] sm:$0xf]
    %v243 = vld [vmem:[%s241 + $0x4] sm:$0xf]
    %v244 = vld [vmem:[%s241 + $0x8] sm:$0xf]
    %v245 = vld [vmem:[%s241 + $0xc] sm:$0xf]
    %v246 = vld [vmem:[%s241 + $0x10] sm:$0xf]
    %v247 = vld [vmem:[%s241 + $0x14] sm:$0xf]
    %v248 = vld [vmem:[%s241 + $0x18] sm:$0xf]
    %v249 = vld [vmem:[%s241 + $0x1c] sm:$0xf]
    %v250 = vld [vmem:[%s241 + $0x20] sm:$0xf]
    %v251 = vld [vmem:[%s241 + $0x24] sm:$0xf]
    %v252 = vld [vmem:[%s241 + $0x28] sm:$0xf]
    %v253 = vld [vmem:[%s241 + $0x2c] sm:$0xf]
    %v254 = vld [vmem:[%s241 + $0x30] sm:$0xf]
    %v255 = vld [vmem:[%s241 + $0x34] sm:$0xf]
    %v256 = vld [vmem:[%s241 + $0x38] sm:$0xf]
    %v257 = vld [vmem:[%s241 + $0x3c] sm:$0xf]
    %s258 = scalar_lea.vmem [#allocation7], 2
    %v259 = vld [vmem:[%s258] sm:$0x1]
    %v261 = vlaneseq
    %v262 = vshrl.u32 %v261, 7
    %v263 = vsub.s32 0, %v262
    %v264 = vrot.slane %v259, %v263
    %v282 = vunpack.c.l.b16 %v242
    %v283 = vunpack.c.l.b16 %v243
    %v284 = vunpack.c.l.b16 %v244
    %v285 = vunpack.c.l.b16 %v245
    %v286 = vunpack.c.l.b16 %v246
    %v287 = vunpack.c.l.b16 %v247
    %v288 = vunpack.c.l.b16 %v248
    %v289 = vunpack.c.l.b16 %v249
    %v290 = vunpack.c.l.b16 %v250
    %v291 = vunpack.c.l.b16 %v251
    %v292 = vunpack.c.l.b16 %v252
    %v293 = vunpack.c.l.b16 %v253
    %v294 = vunpack.c.l.b16 %v254
    %v295 = vunpack.c.l.b16 %v255
    %v296 = vunpack.c.l.b16 %v256
    %v297 = vunpack.c.l.b16 %v257
    %v298 = vpack.c.b16 %v283, %v282
    %v299 = vpack.c.b16 %v285, %v284
    %v300 = vpack.c.b16 %v287, %v286
    %v301 = vpack.c.b16 %v289, %v288
    %v302 = vpack.c.b16 %v291, %v290
    %v303 = vpack.c.b16 %v293, %v292
    %v304 = vpack.c.b16 %v295, %v294
    %v305 = vpack.c.b16 %v297, %v296
    %314 = vmatprep.subr.bf16.mxu0 0
    %315 = vmatpush1.bf16.msra.mxu0 %v305
    %316 = vmatprep.subr.bf16.mxu0 0
    %317 = vmatpush1.bf16.msra.mxu0 %v304
    %318 = vmatprep.subr.bf16.mxu0 0
    %319 = vmatpush1.bf16.msra.mxu0 %v303
    %320 = vmatprep.subr.bf16.mxu0 0
    %321 = vmatpush1.bf16.msra.mxu0 %v302
    %322 = vmatprep.subr.bf16.mxu0 0
    %323 = vmatpush1.bf16.msra.mxu0 %v301
    %324 = vmatprep.subr.bf16.mxu0 0
    %325 = vmatpush1.bf16.msra.mxu0 %v300
    %326 = vmatprep.subr.bf16.mxu0 0
    %327 = vmatpush1.bf16.msra.mxu0 %v299
    %328 = vmatprep.subr.bf16.mxu0 0
    %329 = vmatpush1.bf16.msra.mxu0 %v298
    %330 = vmatprep.subr.bf16.mxu0 0
    %331 = vmatpush2.bf16.msra.mxu0 0
    %332 = vmatprep.subr.bf16.mxu0 0
    %333 = vmatpush2.bf16.msra.mxu0 0
    %334 = vmatprep.subr.bf16.mxu0 0
    %335 = vmatpush2.bf16.msra.mxu0 0
    %336 = vmatprep.subr.bf16.mxu0 0
    %337 = vmatpush2.bf16.msra.mxu0 0
    %338 = vmatprep.subr.bf16.mxu0 0
    %339 = vmatpush2.bf16.msra.mxu0 0
    %340 = vmatprep.subr.bf16.mxu0 0
    %341 = vmatpush2.bf16.msra.mxu0 0
    %342 = vmatprep.subr.bf16.mxu0 0
    %343 = vmatpush2.bf16.msra.mxu0 0
    %344 = vmatprep.subr.bf16.mxu0 0
    %345 = vmatpush2.bf16.msra.mxu0 0
    %346 = vmatprep.mubr.bf16.mxu0 0
    %347 = vmatmul.mubr.bf16.gmra.mxu0 %v240
    %v348 = vpop.f32.mrf.mxu0
    %v349 = vadd.f32 %v264, %v348
    %v350 = vpop.f32.mrf.mxu0
    %v351 = vpop.f32.mrf.mxu0
    %v352 = vpop.f32.mrf.mxu0
    %353 = vdwg.mxu0
    %v354 = vtanh.pop %v349
    %v355 = vpack.c.bf16 %v354, %v354
    %s356 = scalar_lea.vmem [#allocation5], 192
    %v357 = vld [vmem:[%s356] sm:$0xf]
    %v358 = vld [vmem:[%s356 + $0x4] sm:$0xf]
    %v359 = vld [vmem:[%s356 + $0x8] sm:$0xf]
    %v360 = vld [vmem:[%s356 + $0xc] sm:$0xf]
    %v361 = vld [vmem:[%s356 + $0x10] sm:$0xf]
    %v362 = vld [vmem:[%s356 + $0x14] sm:$0xf]
    %v363 = vld [vmem:[%s356 + $0x18] sm:$0xf]
    %v364 = vld [vmem:[%s356 + $0x1c] sm:$0xf]
    %v365 = vld [vmem:[%s356 + $0x20] sm:$0xf]
    %v366 = vld [vmem:[%s356 + $0x24] sm:$0xf]
    %v367 = vld [vmem:[%s356 + $0x28] sm:$0xf]
    %v368 = vld [vmem:[%s356 + $0x2c] sm:$0xf]
    %v369 = vld [vmem:[%s356 + $0x30] sm:$0xf]
    %v370 = vld [vmem:[%s356 + $0x34] sm:$0xf]
    %v371 = vld [vmem:[%s356 + $0x38] sm:$0xf]
    %v372 = vld [vmem:[%s356 + $0x3c] sm:$0xf]
    %s373 = scalar_lea.vmem [#allocation7], 3
    %v374 = vld [vmem:[%s373] sm:$0x1]
    %v376 = vlaneseq
    %v377 = vshrl.u32 %v376, 7
    %v378 = vsub.s32 0, %v377
    %v379 = vrot.slane %v374, %v378
    %v397 = vunpack.c.l.b16 %v357
    %v398 = vunpack.c.l.b16 %v358
    %v399 = vunpack.c.l.b16 %v359
    %v400 = vunpack.c.l.b16 %v360
    %v401 = vunpack.c.l.b16 %v361
    %v402 = vunpack.c.l.b16 %v362
    %v403 = vunpack.c.l.b16 %v363
    %v404 = vunpack.c.l.b16 %v364
    %v405 = vunpack.c.l.b16 %v365
    %v406 = vunpack.c.l.b16 %v366
    %v407 = vunpack.c.l.b16 %v367
    %v408 = vunpack.c.l.b16 %v368
    %v409 = vunpack.c.l.b16 %v369
    %v410 = vunpack.c.l.b16 %v370
    %v411 = vunpack.c.l.b16 %v371
    %v412 = vunpack.c.l.b16 %v372
    %v413 = vpack.c.b16 %v398, %v397
    %v414 = vpack.c.b16 %v400, %v399
    %v415 = vpack.c.b16 %v402, %v401
    %v416 = vpack.c.b16 %v404, %v403
    %v417 = vpack.c.b16 %v406, %v405
    %v418 = vpack.c.b16 %v408, %v407
    %v419 = vpack.c.b16 %v410, %v409
    %v420 = vpack.c.b16 %v412, %v411
    %429 = vmatprep.subr.bf16.mxu0 0
    %430 = vmatpush1.bf16.msra.mxu0 %v420
    %431 = vmatprep.subr.bf16.mxu0 0
    %432 = vmatpush1.bf16.msra.mxu0 %v419
    %433 = vmatprep.subr.bf16.mxu0 0
    %434 = vmatpush1.bf16.msra.mxu0 %v418
    %435 = vmatprep.subr.bf16.mxu0 0
    %436 = vmatpush1.bf16.msra.mxu0 %v417
    %437 = vmatprep.subr.bf16.mxu0 0
    %438 = vmatpush1.bf16.msra.mxu0 %v416
    %439 = vmatprep.subr.bf16.mxu0 0
    %440 = vmatpush1.bf16.msra.mxu0 %v415
    %441 = vmatprep.subr.bf16.mxu0 0
    %442 = vmatpush1.bf16.msra.mxu0 %v414
    %443 = vmatprep.subr.bf16.mxu0 0
    %444 = vmatpush1.bf16.msra.mxu0 %v413
    %445 = vmatprep.subr.bf16.mxu0 0
    %446 = vmatpush2.bf16.msra.mxu0 0
    %447 = vmatprep.subr.bf16.mxu0 0
    %448 = vmatpush2.bf16.msra.mxu0 0
    %449 = vmatprep.subr.bf16.mxu0 0
    %450 = vmatpush2.bf16.msra.mxu0 0
    %451 = vmatprep.subr.bf16.mxu0 0
    %452 = vmatpush2.bf16.msra.mxu0 0
    %453 = vmatprep.subr.bf16.mxu0 0
    %454 = vmatpush2.bf16.msra.mxu0 0
    %455 = vmatprep.subr.bf16.mxu0 0
    %456 = vmatpush2.bf16.msra.mxu0 0
    %457 = vmatprep.subr.bf16.mxu0 0
    %458 = vmatpush2.bf16.msra.mxu0 0
    %459 = vmatprep.subr.bf16.mxu0 0
    %460 = vmatpush2.bf16.msra.mxu0 0
    %461 = vmatprep.mubr.bf16.mxu0 0
    %462 = vmatmul.mubr.bf16.gmra.mxu0 %v355
    %v463 = vpop.f32.mrf.mxu0
    %v464 = vadd.f32 %v379, %v463
    %v465 = vpop.f32.mrf.mxu0
    %v466 = vpop.f32.mrf.mxu0
    %v467 = vpop.f32.mrf.mxu0
    %468 = vdwg.mxu0
    %vm469 = vcmask 64512
    %470 = vst.msk [vmem:[#allocation8] sm:$0xff] %vm469, %v464
    // Predicated region
    $region26: #{tpu_custom_call.1} parent=1 // pred_check
      _
    $region27: #{tpu_custom_call.1} parent=1 // pred_check_branch
      %472 = sbr.rel (0) target = $region29
    $region28: #{tpu_custom_call.1} parent=1 // pred_region
      %s474 = ssub.s32 128, 128
      %475 = vsyncadd [#allocation4], %s474
      %s477 = sshll.u32 [#allocation8], 4
      %s478 = int_to_ptr.vmem [resolvable:$true] %s477
      %480 = dma.vmem_to_hbm [thread:$0]  %s478, 128, %s3, [#allocation4]
    $region29: #{tpu_custom_call.1} parent=1 // pred_fallthru
      _
    // Predicated region
    $region30: #{tpu_custom_call.1} parent=1 // pred_check
      _
    $region31: #{tpu_custom_call.1} parent=1 // pred_check_branch
      %482 = sbr.rel (0) target = $region33
    $region32: #{tpu_custom_call.1} parent=1 // pred_region
      %483 = dma.done [#allocation4], 128
    $region33: #{tpu_custom_call.1} parent=1 // pred_fallthru
      _
    %484 = vsyncpa [#allocation3], 1
    %485 = vsyncpa [#allocation6], 1
    %486 = vsyncpa [#allocation4], 1

</llo_original>
